<compile_context>
chip_gen: v5e
topology: v5e:2x2
jax: 0.10.0
libtpu: 0.0.40
codegen_flags: <defaults>
</compile_context>

<pallas_src>
import functools

import jax
import jax.numpy as jnp
from jax.experimental import pallas as pl
from jax.experimental.pallas import tpu as pltpu

ALPHA = 0.8
GAMMA = 2

_LANE = 128            # vreg lane width
_SUB = 8               # f32 sublanes per vreg (partial-sum tile height)
_MAX_BLOCK_ROWS = 2048 # 2048 x 128 x 4B = 1 MiB per input buffer (fits all gens)


def _round_up(a, b):
    return (a + b - 1) // b * b


def _make_focal_kernel(block_rows, valid_rows, alpha, gamma, last_is_partial):
    """Kernel factory; block_rows / valid_rows / alpha / gamma are static."""
    folds = block_rows // _SUB

    def _fold(vals):
        # (block_rows, 128) -> (8, 128) partial sum via pure VPU adds.
        return jnp.sum(vals.reshape(folds, _SUB, _LANE), axis=0)

    def kernel(x_ref, t_ref, out_ref):
        x = x_ref[...].astype(jnp.float32)
        t = t_ref[...].astype(jnp.float32)

        # Numerically stable BCE matching
        # F.binary_cross_entropy(sigmoid(x), t) incl. its log clamp at -100:
        #   -log(p)   = softplus(-x) = max(-x, 0) + log(1 + exp(-|x|))
        #   -log(1-p) = softplus( x) = max( x, 0) + log(1 + exp(-|x|))
        log_term = jnp.log(1.0 + jnp.exp(-jnp.abs(x)))      # 1 exp + 1 log (EUP)
        neg_log_p = jnp.maximum(-x, 0.0) + log_term
        neg_log_1mp = jnp.maximum(x, 0.0) + log_term
        bce = (t * jnp.minimum(neg_log_p, 100.0)
               + (1.0 - t) * jnp.minimum(neg_log_1mp, 100.0))

        # Keep explicit exp(-bce) so soft (non 0/1) targets stay correct.
        d = 1.0 - jnp.exp(-bce)                              # 1 exp (EUP)
        mod = d * d if gamma == 2 else d ** gamma
        focal = alpha * mod * bce

        if last_is_partial:
            i = pl.program_id(0)
            num = pl.num_programs(0)

            @pl.when(i < num - 1)
            def _():
                out_ref[...] = _fold(focal)

            @pl.when(i == num - 1)
            def _():
                # Mask rows beyond the real data (garbage in the partial block).
                row_ids = jax.lax.broadcasted_iota(jnp.int32, focal.shape, 0)
                ok = (i * block_rows + row_ids) < valid_rows
                out_ref[...] = _fold(jnp.where(ok, focal, 0.0))
        else:
            out_ref[...] = _fold(focal)

    return kernel


@functools.partial(jax.jit, static_argnames=("alpha", "gamma"))
def focal_loss_pallas(inputs, targets, alpha=ALPHA, gamma=GAMMA):
    """Scalar focal loss, semantics identical to the PyTorch FocalLoss.forward."""
    n = inputs.size
    x = jnp.ravel(inputs)            # keep native dtype; cast inside kernel
    t = jnp.ravel(targets)

    # Tail pad (< 128 elements) only when needed, with neutral values that
    # contribute exactly zero focal loss: x = -100 (p ~ 0), t = 0.
    rem = n % _LANE
    if rem:
        pad = _LANE - rem
        x = jnp.pad(x, (0, pad), constant_values=-100.0)
        t = jnp.pad(t, (0, pad), constant_values=0)

    rows = x.size // _LANE
    x2 = x.reshape(rows, _LANE)
    t2 = t.reshape(rows, _LANE)

    block_rows = min(_MAX_BLOCK_ROWS, _round_up(rows, _SUB))
    grid_rows = pl.cdiv(rows, block_rows)
    last_is_partial = (rows % block_rows) != 0

    kernel = _make_focal_kernel(block_rows, rows, float(alpha), int(gamma),
                                last_is_partial)

    partials = pl.pallas_call(
        kernel,
        out_shape=jax.ShapeDtypeStruct((grid_rows * _SUB, _LANE), jnp.float32),
        grid_spec=pltpu.PrefetchScalarGridSpec(
            num_scalar_prefetch=0,
            grid=(grid_rows,),
            in_specs=[
                pl.BlockSpec((block_rows, _LANE), lambda i: (i, 0)),
                pl.BlockSpec((block_rows, _LANE), lambda i: (i, 0)),
            ],
            out_specs=pl.BlockSpec((_SUB, _LANE), lambda i: (i, 0)),
        ),
        compiler_params=pltpu.CompilerParams(
            dimension_semantics=("parallel",),
            vmem_limit_bytes=32 * 1024 * 1024,
        ),
    )(x2, t2)

    return jnp.sum(partials) / jnp.float32(n)


def _focal_loss_ref(inputs, targets, alpha=ALPHA, gamma=GAMMA):
    """Pure-JAX reference mirroring the PyTorch module (sigmoid + clamped logs)."""
    p = jnp.clip(jax.nn.sigmoid(inputs.reshape(-1).astype(jnp.float32)), 0.0, 1.0)
    t = targets.reshape(-1).astype(jnp.float32)
    log_p = jnp.maximum(jnp.log(p), -100.0)
    log_1mp = jnp.maximum(jnp.log(1.0 - p), -100.0)
    bce = -(t * log_p + (1.0 - t) * log_1mp)
    focal = alpha * (1.0 - jnp.exp(-bce)) ** gamma * bce
    return jnp.mean(focal)


if __name__ == "__main__":
    key = jax.random.PRNGKey(0)
    k_in, k_tgt, k_in2, k_tgt2 = jax.random.split(key, 4)

    # NCHW, same convention the PyTorch module receives.
    B, C, H, W = 2, 4, 16, 16
    inputs = jax.random.normal(k_in, (B, C, H, W), dtype=jnp.float32)
    targets = jax.random.bernoulli(k_tgt, 0.5, (B, C, H, W)).astype(jnp.float32)

    loss = jax.block_until_ready(focal_loss_pallas(inputs, targets))
    ref = _focal_loss_ref(inputs, targets)
    assert jnp.allclose(loss, ref, rtol=1e-4, atol=1e-6), (loss, ref)

    # Second, non-128-divisible shape exercising the tail-pad / partial-block path.
    inputs2 = jax.random.normal(k_in2, (1, 3, 7, 11), dtype=jnp.float32)
    targets2 = jax.random.bernoulli(k_tgt2, 0.5, (1, 3, 7, 11)).astype(jnp.float32)

    loss2 = jax.block_until_ready(focal_loss_pallas(inputs2, targets2))
    ref2 = _focal_loss_ref(inputs2, targets2)
    assert jnp.allclose(loss2, ref2, rtol=1e-4, atol=1e-6), (loss2, ref2)

    print("KERNEL_OK")
</pallas_src>

<mosaic_0001>
module attributes {stable_mosaic.version = 11 : i64} {
  func.func @kernel(%arg0: i32, %arg1: memref<16x128xf32, #tpu.memory_space<vmem>>, %arg2: memref<16x128xf32, #tpu.memory_space<vmem>>, %arg3: memref<8x128xf32, #tpu.memory_space<vmem>>) attributes {dimension_semantics = [#tpu.dimension_semantics<parallel>], iteration_bounds = array<i64: 1>, scalar_prefetch = 0 : i64, scratch_operands = 0 : i64, tpu.core_type = #tpu.core_type<tc>, window_params = [{transform_indices = @transform_0, window_bounds = array<i64: 16, 128>}, {transform_indices = @transform_1, window_bounds = array<i64: 16, 128>}, {transform_indices = @transform_2, window_bounds = array<i64: 8, 128>}]} {
    %c0 = arith.constant 0 : index
    %c0_0 = arith.constant 0 : index
    %0 = vector.load %arg1[%c0, %c0_0] : memref<16x128xf32, #tpu.memory_space<vmem>>, vector<16x128xf32>
    %c0_1 = arith.constant 0 : index
    %c0_2 = arith.constant 0 : index
    %1 = vector.load %arg2[%c0_1, %c0_2] : memref<16x128xf32, #tpu.memory_space<vmem>>, vector<16x128xf32>
    %2 = math.absf %0 : vector<16x128xf32>
    %cst = arith.constant 0.000000e+00 : f32
    %3 = vector.broadcast %cst : f32 to vector<16x128xf32>
    %4 = arith.subf %3, %2 : vector<16x128xf32>
    %5 = math.exp %4 : vector<16x128xf32>
    %cst_3 = arith.constant 1.000000e+00 : f32
    %6 = vector.broadcast %cst_3 : f32 to vector<16x128xf32>
    %7 = arith.addf %6, %5 : vector<16x128xf32>
    %8 = math.log %7 : vector<16x128xf32>
    %cst_4 = arith.constant 0.000000e+00 : f32
    %9 = vector.broadcast %cst_4 : f32 to vector<16x128xf32>
    %10 = arith.subf %9, %0 : vector<16x128xf32>
    %cst_5 = arith.constant 0.000000e+00 : f32
    %11 = vector.broadcast %cst_5 : f32 to vector<16x128xf32>
    %12 = arith.maximumf %10, %11 : vector<16x128xf32>
    %13 = arith.addf %12, %8 : vector<16x128xf32>
    %cst_6 = arith.constant 0.000000e+00 : f32
    %14 = vector.broadcast %cst_6 : f32 to vector<16x128xf32>
    %15 = arith.maximumf %0, %14 : vector<16x128xf32>
    %16 = arith.addf %15, %8 : vector<16x128xf32>
    %cst_7 = arith.constant 1.000000e+02 : f32
    %17 = vector.broadcast %cst_7 : f32 to vector<16x128xf32>
    %18 = arith.minimumf %13, %17 : vector<16x128xf32>
    %19 = arith.mulf %1, %18 : vector<16x128xf32>
    %cst_8 = arith.constant 1.000000e+00 : f32
    %20 = vector.broadcast %cst_8 : f32 to vector<16x128xf32>
    %21 = arith.subf %20, %1 : vector<16x128xf32>
    %cst_9 = arith.constant 1.000000e+02 : f32
    %22 = vector.broadcast %cst_9 : f32 to vector<16x128xf32>
    %23 = arith.minimumf %16, %22 : vector<16x128xf32>
    %24 = arith.mulf %21, %23 : vector<16x128xf32>
    %25 = arith.addf %19, %24 : vector<16x128xf32>
    %cst_10 = arith.constant 0.000000e+00 : f32
    %26 = vector.broadcast %cst_10 : f32 to vector<16x128xf32>
    %27 = arith.subf %26, %25 : vector<16x128xf32>
    %28 = math.exp %27 : vector<16x128xf32>
    %cst_11 = arith.constant 1.000000e+00 : f32
    %29 = vector.broadcast %cst_11 : f32 to vector<16x128xf32>
    %30 = arith.subf %29, %28 : vector<16x128xf32>
    %31 = arith.mulf %30, %30 : vector<16x128xf32>
    %cst_12 = arith.constant 8.000000e-01 : f32
    %32 = vector.broadcast %cst_12 : f32 to vector<16x128xf32>
    %33 = arith.mulf %32, %31 : vector<16x128xf32>
    %34 = arith.mulf %33, %25 : vector<16x128xf32>
    %35 = vector.shape_cast %34 : vector<16x128xf32> to vector<2x8x128xf32>
    %cst_13 = arith.constant dense<0.000000e+00> : vector<8x128xf32>
    %36 = vector.multi_reduction <add>, %35, %cst_13 [0] : vector<2x8x128xf32> to vector<8x128xf32>
    %c0_14 = arith.constant 0 : index
    %c0_15 = arith.constant 0 : index
    %37 = vector.load %arg3[%c0_14, %c0_15] : memref<8x128xf32, #tpu.memory_space<vmem>>, vector<8x128xf32>
    tpu.vector_store %arg3[%c0_14, %c0_15], %36 {strides = array<i32>} : memref<8x128xf32, #tpu.memory_space<vmem>>, vector<8x128xf32>,
    return
  }
  func.func @transform_0(%arg0: i32) -> (i32, i32) {
    %c0_i32 = arith.constant 0 : i32
    %c0_i32_0 = arith.constant 0 : i32
    return %arg0, %c0_i32 : i32, i32
  }
  func.func @transform_1(%arg0: i32) -> (i32, i32) {
    %c0_i32 = arith.constant 0 : i32
    %c0_i32_0 = arith.constant 0 : i32
    return %arg0, %c0_i32 : i32, i32
  }
  func.func @transform_2(%arg0: i32) -> (i32, i32) {
    %c0_i32 = arith.constant 0 : i32
    %c0_i32_0 = arith.constant 0 : i32
    return %arg0, %c0_i32 : i32, i32
  }
}

</mosaic_0001>

<llo_original>
// kernel: focal_loss_pallas.1
$region0: #{focal_loss_pallas.1}
  #allocation0 [shape = 'u32[]', space=smem, size = 0x4, offset = 0x4, fixed_abs, tag = 'smem constant byte address 0x4 - core index']
  #allocation1 [shape = 'u32[72,128]{1,0:T(1,128)}', space=vmem, size = 0x9000, scoped, tag = 'internal scratch']
  %s0 = inlined_call_operand.vmem [shape: f32[16,128], index: 0, kind: input, shape index: {}]
  %s1 = inlined_call_operand.vmem [shape: f32[16,128], index: 1, kind: input, shape index: {}]
  %s2 = inlined_call_operand.vmem [shape: f32[8,128], index: 2, kind: output, shape index: {}]
  %s3 = sld [smem:[#allocation0]]
  $region18: #{focal_loss_pallas.1} parent=0
    _
  %s5 = ssub.s32 1, %s3
  %s6 = scalar_select 0, %s5, %s3
  // Predicated region
  $region2: #{focal_loss_pallas.1} parent=0 // pred_check
    _
  $region3: #{focal_loss_pallas.1} parent=0 // pred_check_branch
    %8 = sbr.rel (0) target = $region5
  $region4: #{focal_loss_pallas.1} parent=0 // pred_region
    _
  $region5: #{focal_loss_pallas.1} parent=0 // pred_fallthru
    _
  // Predicated region
  $region6: #{focal_loss_pallas.1} parent=0 // pred_check
    _
  $region7: #{focal_loss_pallas.1} parent=0 // pred_check_branch
    %10 = sbr.rel (0) target = $region9
  $region8: #{focal_loss_pallas.1} parent=0 // pred_region
    _
  $region9: #{focal_loss_pallas.1} parent=0 // pred_fallthru
    _
  %v11 = vld [vmem:[%s0] sm:$0xff]
  %v12 = vld [vmem:[%s0 + $0x8] sm:$0xff]
  %v13 = vld [vmem:[%s1] sm:$0xff]
  %v14 = vld [vmem:[%s1 + $0x8] sm:$0xff]
  %v15 = vand.u32 2147483647, %v11
  %v16 = vand.u32 2147483647, %v12
  %v17 = vsub.f32 0.0, %v15
  %v18 = vsub.f32 0.0, %v16
  %v19 = vmul.f32 %v17, 1.442695
  %v20 = vpow.pop %v19
  %v21 = vmul.f32 %v18, 1.442695
  %v22 = vpow.pop %v21
  %v23 = vadd.f32 %v20, 1.0
  %v24 = vadd.f32 %v22, 1.0
  %v25 = vlog2.pop %v23
  %v26 = vmul.f32 %v25, 0.6931472
  %v27 = vlog2.pop %v24
  %v28 = vmul.f32 %v27, 0.6931472
  %v29 = vsub.f32 0.0, %v11
  %v30 = vsub.f32 0.0, %v12
  %v31 = vmax.f32 %v29, 0.0
  %v32 = vmax.f32 %v30, 0.0
  %v33 = vadd.f32 %v31, %v26
  %v34 = vadd.f32 %v32, %v28
  %v35 = vmax.f32 %v11, 0.0
  %v36 = vmax.f32 %v12, 0.0
  %v37 = vadd.f32 %v35, %v26
  %v38 = vadd.f32 %v36, %v28
  %v39 = vmin.f32 %v33, 100.0
  %v40 = vmin.f32 %v34, 100.0
  %v41 = vmul.f32 %v13, %v39
  %v42 = vmul.f32 %v14, %v40
  %v43 = vsub.f32 1.0, %v13
  %v44 = vsub.f32 1.0, %v14
  %v45 = vmin.f32 %v37, 100.0
  %v46 = vmin.f32 %v38, 100.0
  %v47 = vmul.f32 %v43, %v45
  %v48 = vmul.f32 %v44, %v46
  %v49 = vadd.f32 %v41, %v47
  %v50 = vadd.f32 %v42, %v48
  %v51 = vsub.f32 0.0, %v49
  %v52 = vsub.f32 0.0, %v50
  %v53 = vmul.f32 %v51, 1.442695
  %v54 = vpow.pop %v53
  %v55 = vmul.f32 %v52, 1.442695
  %v56 = vpow.pop %v55
  %v57 = vsub.f32 1.0, %v54
  %v58 = vsub.f32 1.0, %v56
  %v59 = vmul.f32 %v57, %v57
  %v60 = vmul.f32 %v58, %v58
  %v61 = vmul.f32 %v59, 0.8
  %v62 = vmul.f32 %v60, 0.8
  %v63 = vmul.f32 %v61, %v49
  %v64 = vmul.f32 %v62, %v50
  %v65 = vadd.f32 %v63, %v64
  %66 = vst [vmem:[%s2] sm:$0xff] %v65
  // Predicated region
  $region10: #{focal_loss_pallas.1} parent=0 // pred_check
    _
  $region11: #{focal_loss_pallas.1} parent=0 // pred_check_branch
    %68 = sbr.rel (0) target = $region13
  $region12: #{focal_loss_pallas.1} parent=0 // pred_region
    _
  $region13: #{focal_loss_pallas.1} parent=0 // pred_fallthru
    _
  // Predicated region
  $region14: #{focal_loss_pallas.1} parent=0 // pred_check
    _
  $region15: #{focal_loss_pallas.1} parent=0 // pred_check_branch
    %70 = sbr.rel (0) target = $region17
  $region16: #{focal_loss_pallas.1} parent=0 // pred_region
    _
  $region17: #{focal_loss_pallas.1} parent=0 // pred_fallthru
    _

</llo_original>
